<compile_context>
chip_gen: v7x
topology: tpu7x:2x2x1
jax: 0.10.0
libtpu: 0.0.40
codegen_flags: <defaults>
</compile_context>

<pallas_src>
import numpy as np
import jax
import jax.numpy as jnp
from jax.experimental import pallas as pl
from jax.experimental.pallas import tpu as pltpu

D = 32            # hidden_channels (small, consistent with module semantics)

# ----------------------------- synthetic schema -----------------------------
num_nodes_dict = {"author": 64, "paper": 48}
edge_index_keys = [("author", "writes", "paper"), ("paper", "cites", "paper")]
rel2type = {0: edge_index_keys[0], 1: edge_index_keys[1]}
eps_dict = {k: 1.0 / (num_nodes_dict[k[0]] * num_nodes_dict[k[2]]) for k in edge_index_keys}


# ------------------------------- Pallas kernel -------------------------------
def _build_fused_kernel(num_rels, eps_list):
    """Fused forward: per-relation partition function Z_r + batched scores.

    Ref layout:
      tab_ref : (R, N_max, 4D)  columns [Sr | Si | Or | Oi], zero-padded rows
      p_ref   : (R, 4D)         columns [Pr | Pi | 0 | 0]
      uv_ref  : (B, 4D)         columns [u_re | u_im | v_re | v_im]
      oh_ref  : (B, R)          float one-hot over relations
      o_ref   : (B, 4D)         log-prob broadcast across lanes (lane-dense store)
    """

    def kernel(tab_ref, p_ref, uv_ref, oh_ref, o_ref):
        p_all = p_ref[...]                                # (R, 4D)  load once
        oh = oh_ref[...]                                  # (B, R)   load once
        uv = uv_ref[...]                                  # (B, 4D)  load once

        pre = p_all[:, 0:D]                               # (R, D)
        pim = p_all[:, D:2 * D]                           # (R, D)

        # ---------------- batched score over all rows -------------------------
        ur = uv[:, 0:D]
        ui = uv[:, D:2 * D]
        vr = uv[:, 2 * D:3 * D]
        vi = uv[:, 3 * D:4 * D]
        W = ur * vr + ui * vi                             # (B, D)
        Xv = ur * vi - ui * vr                            # (B, D)
        smat = (jax.lax.dot_general(W, pre, (((1,), (1,)), ((), ())),
                                    preferred_element_type=jnp.float32)
                + jax.lax.dot_general(Xv, pim, (((1,), (1,)), ((), ())),
                                      preferred_element_type=jnp.float32))  # (B, R)
        s = jnp.sum(oh * smat, axis=-1, keepdims=True)    # (B, 1)
        phi = s * s

        # ---------------- partition function per relation ---------------------
        # Frobenius form: Z = sum((X^T X) * (O^T O)) with X = [Sr*Pr-Si*Pi | Si*Pr+Sr*Pi]
        def gram(a):                                      # a^T @ a, f32 accumulate
            return jax.lax.dot_general(
                a, a, (((0,), (0,)), ((), ())), preferred_element_type=jnp.float32)

        z_row = jnp.zeros_like(s)                         # (B, 1)
        eps_row = jnp.zeros_like(s)                       # (B, 1)
        for r in range(num_rels):
            T = tab_ref[r]                                # (N_max, 4D)
            Sr = T[:, 0:D]
            Si = T[:, D:2 * D]
            O = T[:, 2 * D:4 * D]                         # (N_max, 2D) = [Or|Oi]
            pr = pre[r:r + 1, :]                          # (1, D)
            pi = pim[r:r + 1, :]

            Xr = Sr * pr - Si * pi                        # (N_max, D)
            Xi = Si * pr + Sr * pi
            X = jnp.concatenate([Xr, Xi], axis=1)         # (N_max, 2D)

            GX = gram(X)                                  # (2D, 2D)
            GO = gram(O)                                  # (2D, 2D)
            # full reduce -> (1, 1)  (lane reduce then sublane reduce)
            z_r = jnp.sum(jnp.sum(GX * GO, axis=-1, keepdims=True),
                          axis=0, keepdims=True)          # (1, 1)

            ohr = oh[:, r:r + 1]                          # (B, 1)
            z_row = z_row + ohr * z_r                     # per-row Z select
            eps_row = eps_row + ohr * eps_list[r]         # eps is a compile-time const

        # log1p(Z): Z is O(1e2-1e3) here so log(1+Z) is exact in f32 (avoids
        # depending on a log1p lowering inside Mosaic).
        lp = jnp.log(phi + eps_row) - jnp.log(1.0 + z_row)
        # rows whose relation is not in the schema -> 0 (matches pure-JAX reference)
        valid = jnp.sum(oh, axis=-1, keepdims=True)
        lp = jnp.where(valid > 0.0, lp, 0.0)

        o_ref[...] = jnp.broadcast_to(lp, o_ref.shape)    # lane-dense unmasked store

    return kernel


def fused_forward_call(tab, p, uv, onehot, eps_list):
    R, N, C = tab.shape
    B = uv.shape[0]
    out = pl.pallas_call(
        _build_fused_kernel(R, eps_list),
        out_shape=jax.ShapeDtypeStruct((B, C), jnp.float32),
        grid=(1,),
        in_specs=[
            pl.BlockSpec((R, N, C), lambda i: (0, 0, 0)),
            pl.BlockSpec(p.shape, lambda i: (0, 0)),
            pl.BlockSpec(uv.shape, lambda i: (0, 0)),
            pl.BlockSpec(onehot.shape, lambda i: (0, 0)),
        ],
        out_specs=pl.BlockSpec((B, C), lambda i: (0, 0)),
        compiler_params=pltpu.CompilerParams(dimension_semantics=("arbitrary",)),
    )(tab, p, uv, onehot)
    return out[:, 0]


# ------------------------------ parameter init -------------------------------
def init_embed(key, n, d, init_scale=0.01):
    # matches ComplEx2.init_params: exp(randn*scale - (log(d)/3 + 0.5*scale^2))
    init_loc = np.log(d) / 3.0 + 0.5 * init_scale ** 2
    return jnp.exp(jax.random.normal(key, (n, d), dtype=jnp.float32) * init_scale - init_loc)


def build_params(seed=0):
    key = jax.random.PRNGKey(seed)
    params = {"head_real": {}, "head_imag": {}, "tail_real": {}, "tail_imag": {}}
    for nt, n in num_nodes_dict.items():
        for name in ("head_real", "head_imag", "tail_real", "tail_imag"):
            key, sub = jax.random.split(key)
            params[name][nt] = init_embed(sub, n, D)
    key, k1 = jax.random.split(key)
    key, k2 = jax.random.split(key)
    params["rel_real"] = init_embed(k1, len(rel2type), D)
    params["rel_imag"] = init_embed(k2, len(rel2type), D)
    return params


# --------------------------------- forward -----------------------------------
# dropout = 0.0 -> no dropout masks (matches module default eval path).
# TODO(synk): training-mode dropout masks (set_dropout_masks) not implemented.
def complex2_forward(params, head, relation, tail):
    B = head.shape[0]
    rels = sorted(rel2type.keys())
    R = len(rels)

    # common padded row count (multiple of 8 for sublane alignment)
    n_max = 0
    for rel in rels:
        h, _, t = rel2type[rel]
        n_max = max(n_max, num_nodes_dict[h], num_nodes_dict[t])
    n_max = ((n_max + 7) // 8) * 8

    def pad_rows(x):
        return jnp.pad(x, ((0, n_max - x.shape[0]), (0, 0)))

    tab_list = []
    eps_list = []
    u_re = jnp.zeros((B, D), jnp.float32)
    u_im = jnp.zeros((B, D), jnp.float32)
    v_re = jnp.zeros((B, D), jnp.float32)
    v_im = jnp.zeros((B, D), jnp.float32)

    for rel in rels:
        h, rname, t = rel2type[rel]
        # packed per-relation table, columns [Sr|Si|Or|Oi], zero-padded rows
        tab_list.append(jnp.concatenate(
            [pad_rows(params["head_real"][h]), pad_rows(params["head_imag"][h]),
             pad_rows(params["tail_real"][t]), pad_rows(params["tail_imag"][t])],
            axis=1))                                                       # (n_max, 4D)
        eps_list.append(float(eps_dict[(h, rname, t)]))
        # embedding lookup is glue (XLA gather); index 0 for masked-out rows
        mask = relation == rel
        hid = jnp.where(mask, head, 0)
        tid = jnp.where(mask, tail, 0)
        m2 = mask[:, None]
        u_re = jnp.where(m2, params["head_real"][h][hid], u_re)
        u_im = jnp.where(m2, params["head_imag"][h][hid], u_im)
        v_re = jnp.where(m2, params["tail_real"][t][tid], v_re)
        v_im = jnp.where(m2, params["tail_imag"][t][tid], v_im)

    tab = jnp.stack(tab_list, axis=0)                                      # (R, n_max, 4D)
    uv = jnp.concatenate([u_re, u_im, v_re, v_im], axis=1)                 # (B, 4D)

    rel_arr = jnp.asarray(rels)
    pre = params["rel_real"][rel_arr]                                      # (R, D)
    pim = params["rel_imag"][rel_arr]
    p = jnp.concatenate([pre, pim, jnp.zeros((R, 2 * D), jnp.float32)], axis=1)  # (R, 4D)

    rel_idx = jnp.asarray(rels, dtype=relation.dtype)
    onehot = (relation[:, None] == rel_idx[None, :]).astype(jnp.float32)   # (B, R)

    return fused_forward_call(tab, p, uv, onehot, eps_list)                # (B,)


# ------------------------------ pure-JAX reference ----------------------------
def complex2_forward_ref(params, head, relation, tail):
    B = head.shape[0]
    log_prob = jnp.zeros((B,), dtype=jnp.float32)
    for rel, (h, rname, t) in rel2type.items():
        mask = relation == rel
        Sr = params["head_real"][h]; Si = params["head_imag"][h]
        Or = params["tail_real"][t]; Oi = params["tail_imag"][t]
        Pr = params["rel_real"][rel][None, :]; Pi = params["rel_imag"][rel][None, :]
        SrSr = Sr.T @ Sr; SiSi = Si.T @ Si; SrSi = Sr.T @ Si; SiSr = Si.T @ Sr
        OrOr = Or.T @ Or; OiOi = Oi.T @ Oi; OrOi = Or.T @ Oi; OiOr = Oi.T @ Or
        A2 = (Pr @ (SrSr * OrOr) @ Pr.T).sum(); B2 = (Pr @ (SiSi * OiOi) @ Pr.T).sum()
        C2 = (Pi @ (SrSr * OiOi) @ Pi.T).sum(); D2 = (Pi @ (SiSi * OrOr) @ Pi.T).sum()
        AB = (Pr @ (SrSi * OrOi) @ Pr.T).sum(); AC = (Pr @ (SrSr * OrOi) @ Pi.T).sum()
        AD = (Pr @ (SrSi * OrOr) @ Pi.T).sum(); BC = (Pr @ (SiSr * OiOi) @ Pi.T).sum()
        BD = (Pr @ (SiSi * OiOr) @ Pi.T).sum(); CD = (Pi @ (SrSi * OiOr) @ Pi.T).sum()
        Z = A2 + B2 + C2 + D2 + 2 * AB + 2 * AC + 2 * BC - 2 * AD - 2 * BD - 2 * CD
        hid = jnp.where(mask, head, 0); tid = jnp.where(mask, tail, 0)
        u_re = Sr[hid]; u_im = Si[hid]; v_re = Or[tid]; v_im = Oi[tid]
        s = jnp.sum(u_re * Pr[0] * v_re + u_im * Pr[0] * v_im
                    + u_re * Pi[0] * v_im - u_im * Pi[0] * v_re, axis=-1)
        phi = s ** 2
        lp = jnp.log(phi + eps_dict[(h, rname, t)]) - jnp.log1p(Z)
        log_prob = jnp.where(mask, lp, log_prob)
    return log_prob


# ----------------------------------- main -------------------------------------
if __name__ == "__main__":
    params = build_params(seed=0)

    key = jax.random.PRNGKey(0)
    k_h, k_t = jax.random.split(key)
    B = 8
    relation = jnp.array([0, 1, 0, 1, 0, 0, 1, 1], dtype=jnp.int32)
    head = jax.random.randint(k_h, (B,), 0, 48, dtype=jnp.int32)  # valid for both node types
    tail = jax.random.randint(k_t, (B,), 0, 48, dtype=jnp.int32)

    fwd = jax.jit(complex2_forward)
    out = fwd(params, head, relation, tail)
    out = jax.block_until_ready(out)

    ref = complex2_forward_ref(params, head, relation, tail)
    assert out.shape == (B,) and out.dtype == jnp.float32
    assert np.all(np.isfinite(np.asarray(out)))
    assert np.allclose(np.asarray(out), np.asarray(ref), rtol=5e-3, atol=1e-4)

    print("KERNEL_OK")
</pallas_src>

<mosaic_0001>
module attributes {stable_mosaic.version = 11 : i64} {
  func.func @kernel(%arg0: i32, %arg1: memref<2x64x128xf32, #tpu.memory_space<vmem>>, %arg2: memref<2x128xf32, #tpu.memory_space<vmem>>, %arg3: memref<8x128xf32, #tpu.memory_space<vmem>>, %arg4: memref<8x2xf32, #tpu.memory_space<vmem>>, %arg5: memref<8x128xf32, #tpu.memory_space<vmem>>) attributes {dimension_semantics = [#tpu.dimension_semantics<arbitrary>], iteration_bounds = array<i64: 1>, scalar_prefetch = 0 : i64, scratch_operands = 0 : i64, tpu.core_type = #tpu.core_type<tc>, window_params = [{pipeline_mode = #tpu.pipeline_mode<synchronous>, transform_indices = @transform_0, window_bounds = array<i64: 2, 64, 128>}, {pipeline_mode = #tpu.pipeline_mode<synchronous>, transform_indices = @transform_1, window_bounds = array<i64: 2, 128>}, {pipeline_mode = #tpu.pipeline_mode<synchronous>, transform_indices = @transform_2, window_bounds = array<i64: 8, 128>}, {pipeline_mode = #tpu.pipeline_mode<synchronous>, transform_indices = @transform_3, window_bounds = array<i64: 8, 2>}, {pipeline_mode = #tpu.pipeline_mode<synchronous>, transform_indices = @transform_4, window_bounds = array<i64: 8, 128>}]} {
    %c0 = arith.constant 0 : index
    %c0_0 = arith.constant 0 : index
    %0 = vector.load %arg2[%c0, %c0_0] : memref<2x128xf32, #tpu.memory_space<vmem>>, vector<2x128xf32>
    %c0_1 = arith.constant 0 : index
    %c0_2 = arith.constant 0 : index
    %1 = vector.load %arg4[%c0_1, %c0_2] : memref<8x2xf32, #tpu.memory_space<vmem>>, vector<8x2xf32>
    %c0_3 = arith.constant 0 : index
    %c0_4 = arith.constant 0 : index
    %2 = vector.load %arg3[%c0_3, %c0_4] : memref<8x128xf32, #tpu.memory_space<vmem>>, vector<8x128xf32>
    %3 = vector.extract_strided_slice %0 {offsets = [0, 0], sizes = [2, 32], strides = [1, 1]} : vector<2x128xf32> to vector<2x32xf32>
    %4 = vector.extract_strided_slice %0 {offsets = [0, 32], sizes = [2, 32], strides = [1, 1]} : vector<2x128xf32> to vector<2x32xf32>
    %5 = vector.extract_strided_slice %2 {offsets = [0, 0], sizes = [8, 32], strides = [1, 1]} : vector<8x128xf32> to vector<8x32xf32>
    %6 = vector.extract_strided_slice %2 {offsets = [0, 32], sizes = [8, 32], strides = [1, 1]} : vector<8x128xf32> to vector<8x32xf32>
    %7 = vector.extract_strided_slice %2 {offsets = [0, 64], sizes = [8, 32], strides = [1, 1]} : vector<8x128xf32> to vector<8x32xf32>
    %8 = vector.extract_strided_slice %2 {offsets = [0, 96], sizes = [8, 32], strides = [1, 1]} : vector<8x128xf32> to vector<8x32xf32>
    %9 = arith.mulf %5, %7 : vector<8x32xf32>
    %10 = arith.mulf %6, %8 : vector<8x32xf32>
    %11 = arith.addf %9, %10 : vector<8x32xf32>
    %12 = arith.mulf %5, %8 : vector<8x32xf32>
    %13 = arith.mulf %6, %7 : vector<8x32xf32>
    %14 = arith.subf %12, %13 : vector<8x32xf32>
    %cst = arith.constant dense<0.000000e+00> : vector<8x2xf32>
    %15 = tpu.matmul %11, %3, %cst {dimension_numbers = #tpu.dot_dimension_numbers<[1], [1], [0], [0], [0, 0, 1, 0], [], []>} : vector<8x32xf32>, vector<2x32xf32>, vector<8x2xf32> -> vector<8x2xf32>
    %cst_5 = arith.constant dense<0.000000e+00> : vector<8x2xf32>
    %16 = tpu.matmul %14, %4, %cst_5 {dimension_numbers = #tpu.dot_dimension_numbers<[1], [1], [0], [0], [0, 0, 1, 0], [], []>} : vector<8x32xf32>, vector<2x32xf32>, vector<8x2xf32> -> vector<8x2xf32>
    %17 = arith.addf %15, %16 : vector<8x2xf32>
    %18 = arith.mulf %1, %17 : vector<8x2xf32>
    %cst_6 = arith.constant dense<0.000000e+00> : vector<8xf32>
    %19 = vector.multi_reduction <add>, %18, %cst_6 [1] : vector<8x2xf32> to vector<8xf32>
    %20 = vector.shape_cast %19 : vector<8xf32> to vector<8x1xf32>
    %21 = arith.mulf %20, %20 : vector<8x1xf32>
    %cst_7 = arith.constant 0.000000e+00 : f32
    %22 = vector.broadcast %cst_7 : f32 to vector<8x1xf32>
    %cst_8 = arith.constant 0.000000e+00 : f32
    %23 = vector.broadcast %cst_8 : f32 to vector<8x1xf32>
    %c0_9 = arith.constant 0 : index
    %c0_10 = arith.constant 0 : index
    %c0_11 = arith.constant 0 : index
    %24 = vector.load %arg1[%c0_9, %c0_10, %c0_11] : memref<2x64x128xf32, #tpu.memory_space<vmem>>, vector<1x64x128xf32>
    %25 = vector.shape_cast %24 : vector<1x64x128xf32> to vector<64x128xf32>
    %26 = vector.extract_strided_slice %25 {offsets = [0, 0], sizes = [64, 32], strides = [1, 1]} : vector<64x128xf32> to vector<64x32xf32>
    %27 = vector.extract_strided_slice %25 {offsets = [0, 32], sizes = [64, 32], strides = [1, 1]} : vector<64x128xf32> to vector<64x32xf32>
    %28 = vector.extract_strided_slice %25 {offsets = [0, 64], sizes = [64, 64], strides = [1, 1]} : vector<64x128xf32> to vector<64x64xf32>
    %29 = vector.extract_strided_slice %3 {offsets = [0, 0], sizes = [1, 32], strides = [1, 1]} : vector<2x32xf32> to vector<1x32xf32>
    %30 = vector.extract_strided_slice %4 {offsets = [0, 0], sizes = [1, 32], strides = [1, 1]} : vector<2x32xf32> to vector<1x32xf32>
    %31 = vector.broadcast %29 : vector<1x32xf32> to vector<64x32xf32>
    %32 = arith.mulf %26, %31 : vector<64x32xf32>
    %33 = vector.broadcast %30 : vector<1x32xf32> to vector<64x32xf32>
    %34 = arith.mulf %27, %33 : vector<64x32xf32>
    %35 = arith.subf %32, %34 : vector<64x32xf32>
    %36 = vector.broadcast %29 : vector<1x32xf32> to vector<64x32xf32>
    %37 = arith.mulf %27, %36 : vector<64x32xf32>
    %38 = vector.broadcast %30 : vector<1x32xf32> to vector<64x32xf32>
    %39 = arith.mulf %26, %38 : vector<64x32xf32>
    %40 = arith.addf %37, %39 : vector<64x32xf32>
    %41 = tpu.concatenate %35, %40 in 1 : vector<64x32xf32>, vector<64x32xf32> -> vector<64x64xf32>
    %cst_12 = arith.constant dense<0.000000e+00> : vector<64x64xf32>
    %42 = tpu.matmul %41, %41, %cst_12 {dimension_numbers = #tpu.dot_dimension_numbers<[0], [0], [1], [1], [0, 1, 1, 1], [], []>} : vector<64x64xf32>, vector<64x64xf32>, vector<64x64xf32> -> vector<64x64xf32>
    %cst_13 = arith.constant dense<0.000000e+00> : vector<64x64xf32>
    %43 = tpu.matmul %28, %28, %cst_13 {dimension_numbers = #tpu.dot_dimension_numbers<[0], [0], [1], [1], [0, 1, 1, 1], [], []>} : vector<64x64xf32>, vector<64x64xf32>, vector<64x64xf32> -> vector<64x64xf32>
    %44 = arith.mulf %42, %43 : vector<64x64xf32>
    %cst_14 = arith.constant dense<0.000000e+00> : vector<64xf32>
    %45 = vector.multi_reduction <add>, %44, %cst_14 [1] : vector<64x64xf32> to vector<64xf32>
    %46 = vector.shape_cast %45 : vector<64xf32> to vector<64x1xf32>
    %cst_15 = arith.constant dense<0.000000e+00> : vector<1xf32>
    %47 = vector.multi_reduction <add>, %46, %cst_15 [0] : vector<64x1xf32> to vector<1xf32>
    %48 = vector.shape_cast %47 : vector<1xf32> to vector<1x1xf32>
    %49 = vector.extract_strided_slice %1 {offsets = [0, 0], sizes = [8, 1], strides = [1, 1]} : vector<8x2xf32> to vector<8x1xf32>
    %50 = vector.broadcast %48 : vector<1x1xf32> to vector<8x1xf32>
    %51 = arith.mulf %49, %50 : vector<8x1xf32>
    %52 = arith.addf %22, %51 : vector<8x1xf32>
    %cst_16 = arith.constant 3.25520843E-4 : f32
    %53 = vector.broadcast %cst_16 : f32 to vector<8x1xf32>
    %54 = arith.mulf %49, %53 : vector<8x1xf32>
    %55 = arith.addf %23, %54 : vector<8x1xf32>
    %c1 = arith.constant 1 : index
    %c0_17 = arith.constant 0 : index
    %c0_18 = arith.constant 0 : index
    %56 = vector.load %arg1[%c1, %c0_17, %c0_18] : memref<2x64x128xf32, #tpu.memory_space<vmem>>, vector<1x64x128xf32>
    %57 = vector.shape_cast %56 : vector<1x64x128xf32> to vector<64x128xf32>
    %58 = vector.extract_strided_slice %57 {offsets = [0, 0], sizes = [64, 32], strides = [1, 1]} : vector<64x128xf32> to vector<64x32xf32>
    %59 = vector.extract_strided_slice %57 {offsets = [0, 32], sizes = [64, 32], strides = [1, 1]} : vector<64x128xf32> to vector<64x32xf32>
    %60 = vector.extract_strided_slice %57 {offsets = [0, 64], sizes = [64, 64], strides = [1, 1]} : vector<64x128xf32> to vector<64x64xf32>
    %61 = vector.extract_strided_slice %3 {offsets = [1, 0], sizes = [1, 32], strides = [1, 1]} : vector<2x32xf32> to vector<1x32xf32>
    %62 = vector.extract_strided_slice %4 {offsets = [1, 0], sizes = [1, 32], strides = [1, 1]} : vector<2x32xf32> to vector<1x32xf32>
    %63 = vector.broadcast %61 : vector<1x32xf32> to vector<64x32xf32>
    %64 = arith.mulf %58, %63 : vector<64x32xf32>
    %65 = vector.broadcast %62 : vector<1x32xf32> to vector<64x32xf32>
    %66 = arith.mulf %59, %65 : vector<64x32xf32>
    %67 = arith.subf %64, %66 : vector<64x32xf32>
    %68 = vector.broadcast %61 : vector<1x32xf32> to vector<64x32xf32>
    %69 = arith.mulf %59, %68 : vector<64x32xf32>
    %70 = vector.broadcast %62 : vector<1x32xf32> to vector<64x32xf32>
    %71 = arith.mulf %58, %70 : vector<64x32xf32>
    %72 = arith.addf %69, %71 : vector<64x32xf32>
    %73 = tpu.concatenate %67, %72 in 1 : vector<64x32xf32>, vector<64x32xf32> -> vector<64x64xf32>
    %cst_19 = arith.constant dense<0.000000e+00> : vector<64x64xf32>
    %74 = tpu.matmul %73, %73, %cst_19 {dimension_numbers = #tpu.dot_dimension_numbers<[0], [0], [1], [1], [0, 1, 1, 1], [], []>} : vector<64x64xf32>, vector<64x64xf32>, vector<64x64xf32> -> vector<64x64xf32>
    %cst_20 = arith.constant dense<0.000000e+00> : vector<64x64xf32>
    %75 = tpu.matmul %60, %60, %cst_20 {dimension_numbers = #tpu.dot_dimension_numbers<[0], [0], [1], [1], [0, 1, 1, 1], [], []>} : vector<64x64xf32>, vector<64x64xf32>, vector<64x64xf32> -> vector<64x64xf32>
    %76 = arith.mulf %74, %75 : vector<64x64xf32>
    %cst_21 = arith.constant dense<0.000000e+00> : vector<64xf32>
    %77 = vector.multi_reduction <add>, %76, %cst_21 [1] : vector<64x64xf32> to vector<64xf32>
    %78 = vector.shape_cast %77 : vector<64xf32> to vector<64x1xf32>
    %cst_22 = arith.constant dense<0.000000e+00> : vector<1xf32>
    %79 = vector.multi_reduction <add>, %78, %cst_22 [0] : vector<64x1xf32> to vector<1xf32>
    %80 = vector.shape_cast %79 : vector<1xf32> to vector<1x1xf32>
    %81 = vector.extract_strided_slice %1 {offsets = [0, 1], sizes = [8, 1], strides = [1, 1]} : vector<8x2xf32> to vector<8x1xf32>
    %82 = vector.broadcast %80 : vector<1x1xf32> to vector<8x1xf32>
    %83 = arith.mulf %81, %82 : vector<8x1xf32>
    %84 = arith.addf %52, %83 : vector<8x1xf32>
    %cst_23 = arith.constant 4.34027781E-4 : f32
    %85 = vector.broadcast %cst_23 : f32 to vector<8x1xf32>
    %86 = arith.mulf %81, %85 : vector<8x1xf32>
    %87 = arith.addf %55, %86 : vector<8x1xf32>
    %88 = arith.addf %21, %87 : vector<8x1xf32>
    %89 = math.log %88 : vector<8x1xf32>
    %cst_24 = arith.constant 1.000000e+00 : f32
    %90 = vector.broadcast %cst_24 : f32 to vector<8x1xf32>
    %91 = arith.addf %90, %84 : vector<8x1xf32>
    %92 = math.log %91 : vector<8x1xf32>
    %93 = arith.subf %89, %92 : vector<8x1xf32>
    %cst_25 = arith.constant dense<0.000000e+00> : vector<8xf32>
    %94 = vector.multi_reduction <add>, %1, %cst_25 [1] : vector<8x2xf32> to vector<8xf32>
    %95 = vector.shape_cast %94 : vector<8xf32> to vector<8x1xf32>
    %cst_26 = arith.constant 0.000000e+00 : f32
    %96 = vector.broadcast %cst_26 : f32 to vector<8x1xf32>
    %97 = arith.cmpf ogt, %95, %96 : vector<8x1xf32>
    %cst_27 = arith.constant 0.000000e+00 : f32
    %98 = vector.broadcast %cst_27 : f32 to vector<8x1xf32>
    %99 = arith.select %97, %93, %98 : vector<8x1xi1>, vector<8x1xf32>
    %100 = vector.shape_cast %99 : vector<8x1xf32> to vector<8x1xf32>
    %101 = vector.broadcast %100 : vector<8x1xf32> to vector<8x128xf32>
    %c0_28 = arith.constant 0 : index
    %c0_29 = arith.constant 0 : index
    %102 = vector.load %arg5[%c0_28, %c0_29] : memref<8x128xf32, #tpu.memory_space<vmem>>, vector<8x128xf32>
    tpu.vector_store %arg5[%c0_28, %c0_29], %101 {strides = array<i32>} : memref<8x128xf32, #tpu.memory_space<vmem>>, vector<8x128xf32>,
    return
  }
  func.func @transform_0(%arg0: i32) -> (i32, i32, i32) {
    %c0_i32 = arith.constant 0 : i32
    %c0_i32_0 = arith.constant 0 : i32
    %c0_i32_1 = arith.constant 0 : i32
    %c0_i32_2 = arith.constant 0 : i32
    return %c0_i32, %c0_i32_0, %c0_i32_1 : i32, i32, i32
  }
  func.func @transform_1(%arg0: i32) -> (i32, i32) {
    %c0_i32 = arith.constant 0 : i32
    %c0_i32_0 = arith.constant 0 : i32
    %c0_i32_1 = arith.constant 0 : i32
    return %c0_i32, %c0_i32_0 : i32, i32
  }
  func.func @transform_2(%arg0: i32) -> (i32, i32) {
    %c0_i32 = arith.constant 0 : i32
    %c0_i32_0 = arith.constant 0 : i32
    %c0_i32_1 = arith.constant 0 : i32
    return %c0_i32, %c0_i32_0 : i32, i32
  }
  func.func @transform_3(%arg0: i32) -> (i32, i32) {
    %c0_i32 = arith.constant 0 : i32
    %c0_i32_0 = arith.constant 0 : i32
    %c0_i32_1 = arith.constant 0 : i32
    return %c0_i32, %c0_i32_0 : i32, i32
  }
  func.func @transform_4(%arg0: i32) -> (i32, i32) {
    %c0_i32 = arith.constant 0 : i32
    %c0_i32_0 = arith.constant 0 : i32
    %c0_i32_1 = arith.constant 0 : i32
    return %c0_i32, %c0_i32_0 : i32, i32
  }
}

</mosaic_0001>

<llo_original>
// kernel: complex2_forward.1
$region0: #{complex2_forward.1}
  #allocation0 [shape = 'u32[]', space=smem, size = 0x4, offset = 0x4, fixed_abs, tag = 'smem constant byte address 0x4 - core index']
  #allocation1 [shape = 'u32[144,128]{1,0:T(1,128)}', space=vmem, size = 0x12000, scoped, tag = 'internal scratch']
  %s0 = inlined_call_operand.vmem [shape: f32[2,64,128], index: 0, kind: input, shape index: {}]
  %s1 = inlined_call_operand.vmem [shape: f32[2,128], index: 1, kind: input, shape index: {}]
  %s2 = inlined_call_operand.vmem [shape: f32[8,128], index: 2, kind: input, shape index: {}]
  %s3 = inlined_call_operand.vmem [shape: f32[8,2], index: 3, kind: input, shape index: {}]
  %s4 = inlined_call_operand.vmem [shape: f32[8,128], index: 4, kind: output, shape index: {}]
  %s5 = sld [smem:[#allocation0]]
  $region26: #{complex2_forward.1} parent=0
    _
  %s7 = ssub.s32 1, %s5
  %s8 = scalar_select 0, %s7, %s5
  // Predicated region
  $region2: #{complex2_forward.1} parent=0 // pred_check
    _
  $region3: #{complex2_forward.1} parent=0 // pred_check_branch
    %10 = sbr.rel (0) target = $region5
  $region4: #{complex2_forward.1} parent=0 // pred_region
    _
  $region5: #{complex2_forward.1} parent=0 // pred_fallthru
    _
  // Predicated region
  $region6: #{complex2_forward.1} parent=0 // pred_check
    _
  $region7: #{complex2_forward.1} parent=0 // pred_check_branch
    %12 = sbr.rel (0) target = $region9
  $region8: #{complex2_forward.1} parent=0 // pred_region
    _
  $region9: #{complex2_forward.1} parent=0 // pred_fallthru
    _
  // Predicated region
  $region10: #{complex2_forward.1} parent=0 // pred_check
    _
  $region11: #{complex2_forward.1} parent=0 // pred_check_branch
    %14 = sbr.rel (0) target = $region13
  $region12: #{complex2_forward.1} parent=0 // pred_region
    _
  $region13: #{complex2_forward.1} parent=0 // pred_fallthru
    _
  // Predicated region
  $region14: #{complex2_forward.1} parent=0 // pred_check
    _
  $region15: #{complex2_forward.1} parent=0 // pred_check_branch
    %16 = sbr.rel (0) target = $region17
  $region16: #{complex2_forward.1} parent=0 // pred_region
    _
  $region17: #{complex2_forward.1} parent=0 // pred_fallthru
    _
  %v17 = vld [vmem:[%s1] sm:$0x3]
  %v18 = vld [vmem:[%s3] sm:$0xff]
  %v19 = vld [vmem:[%s2] sm:$0xff]
  %21 = vrot.lane.b32.xlu0 %v19, 64
  %v22 = vpop.permute.xlu0 %21
  %v24 = vmul.f32 %v19, %v22
  %26 = vrot.lane.b32.xlu0 %v24, 96
  %v27 = vpop.permute.xlu0 %26
  %v29 = vadd.f32 %v24, %v27
  %30 = vrot.lane.b32.xlu0 %v19, 32
  %v31 = vpop.permute.xlu0 %30
  %v33 = vmul.f32 %v19, %v31
  %34 = vrot.lane.b32.xlu0 %v19, 96
  %v35 = vpop.permute.xlu0 %34
  %v37 = vmul.f32 %v19, %v35
  %39 = vrot.lane.b32.xlu0 %v37, 96
  %v40 = vpop.permute.xlu0 %39
  %v42 = vsub.f32 %v33, %v40
  %44 = vrot.lane.b32.xlu0 %v17, 96
  %v45 = vpop.permute.xlu0 %44
  %vm46 = vcmask 261120
  %v48 = vsel %vm46, %v42, 0
  %v50 = vsel %vm46, %v45, 0
  %52 = vmatprep.subr.mxu0 0.0
  %53 = vmatpush1.xpose.msra.mxu0 %v50
  %54 = vmatprep.subr.mxu0 0.0
  %55 = vmatpush1.xpose.msra.mxu0 0.0
  %56 = vmatprep.subr.mxu0 0.0
  %57 = vmatpush1.xpose.msra.mxu0 0.0
  %58 = vmatprep.subr.mxu0 0.0
  %59 = vmatpush1.xpose.msra.mxu0 0.0
  %60 = vmatprep.subr.mxu0 0.0
  %61 = vmatpush1.xpose.msra.mxu0 0.0
  %62 = vmatprep.subr.mxu0 0.0
  %63 = vmatpush1.xpose.msra.mxu0 0.0
  %64 = vmatprep.subr.mxu0 0.0
  %65 = vmatpush1.xpose.msra.mxu0 0.0
  %66 = vmatprep.subr.mxu0 0.0
  %67 = vmatpush1.xpose.msra.mxu0 0.0
  %68 = vmatprep.subr.mxu0 0.0
  %69 = vmatpush1.xpose.msra.mxu0 0.0
  %70 = vmatprep.subr.mxu0 0.0
  %71 = vmatpush1.xpose.msra.mxu0 0.0
  %72 = vmatprep.subr.mxu0 0.0
  %73 = vmatpush1.xpose.msra.mxu0 0.0
  %74 = vmatprep.subr.mxu0 0.0
  %75 = vmatpush1.xpose.msra.mxu0 0.0
  %76 = vmatprep.subr.mxu0 0.0
  %77 = vmatpush1.xpose.msra.mxu0 0.0
  %78 = vmatprep.subr.mxu0 0.0
  %79 = vmatpush1.xpose.msra.mxu0 0.0
  %80 = vmatprep.subr.mxu0 0.0
  %81 = vmatpush1.xpose.msra.mxu0 0.0
  %82 = vmatprep.subr.mxu0 0.0
  %83 = vmatpush1.xpose.msra.mxu0 0.0
  %84 = vmatprep.subr.mxu0 0.0
  %85 = vmatpush1.xpose.msra.mxu0 0.0
  %86 = vmatprep.subr.mxu0 0.0
  %87 = vmatpush1.xpose.msra.mxu0 0.0
  %88 = vmatprep.subr.mxu0 0.0
  %89 = vmatpush1.xpose.msra.mxu0 0.0
  %90 = vmatprep.subr.mxu0 0.0
  %91 = vmatpush1.xpose.msra.mxu0 0.0
  %92 = vmatprep.subr.mxu0 0.0
  %93 = vmatpush1.xpose.msra.mxu0 0.0
  %94 = vmatprep.subr.mxu0 0.0
  %95 = vmatpush1.xpose.msra.mxu0 0.0
  %96 = vmatprep.subr.mxu0 0.0
  %97 = vmatpush1.xpose.msra.mxu0 0.0
  %98 = vmatprep.subr.mxu0 0.0
  %99 = vmatpush1.xpose.msra.mxu0 0.0
  %100 = vmatprep.subr.mxu0 0.0
  %101 = vmatpush1.xpose.msra.mxu0 0.0
  %102 = vmatprep.subr.mxu0 0.0
  %103 = vmatpush1.xpose.msra.mxu0 0.0
  %104 = vmatprep.subr.mxu0 0.0
  %105 = vmatpush1.xpose.msra.mxu0 0.0
  %106 = vmatprep.subr.mxu0 0.0
  %107 = vmatpush1.xpose.msra.mxu0 0.0
  %108 = vmatprep.subr.mxu0 0.0
  %109 = vmatpush1.xpose.msra.mxu0 0.0
  %110 = vmatprep.subr.mxu0 0.0
  %111 = vmatpush1.xpose.msra.mxu0 0.0
  %112 = vmatprep.subr.mxu0 0.0
  %113 = vmatpush1.xpose.msra.mxu0 0.0
  %114 = vmatprep.subr.mxu0 0.0
  %115 = vmatpush1.xpose.msra.mxu0 0.0
  %116 = vmatprep.mubr.f32.mxu0 0.0
  %117 = vmatmul.mubr.f32.gmra.mrb[0].mxu0 %v48
  %v118 = vpop.f32.mrb[0].mxu0
  %v119 = vadd.f32 0.0, %v118
  %v120 = vpop.f32.mrb[0].mxu0
  %121 = vdwg.mxu0
  %v123 = vsel %vm46, %v29, 0
  %v125 = vsel %vm46, %v17, 0
  %127 = vmatprep.subr.mxu0 0.0
  %128 = vmatpush1.xpose.msra.mxu0 %v125
  %129 = vmatprep.subr.mxu0 0.0
  %130 = vmatpush1.xpose.msra.mxu0 0.0
  %131 = vmatprep.subr.mxu0 0.0
  %132 = vmatpush1.xpose.msra.mxu0 0.0
  %133 = vmatprep.subr.mxu0 0.0
  %134 = vmatpush1.xpose.msra.mxu0 0.0
  %135 = vmatprep.subr.mxu0 0.0
  %136 = vmatpush1.xpose.msra.mxu0 0.0
  %137 = vmatprep.subr.mxu0 0.0
  %138 = vmatpush1.xpose.msra.mxu0 0.0
  %139 = vmatprep.subr.mxu0 0.0
  %140 = vmatpush1.xpose.msra.mxu0 0.0
  %141 = vmatprep.subr.mxu0 0.0
  %142 = vmatpush1.xpose.msra.mxu0 0.0
  %143 = vmatprep.subr.mxu0 0.0
  %144 = vmatpush1.xpose.msra.mxu0 0.0
  %145 = vmatprep.subr.mxu0 0.0
  %146 = vmatpush1.xpose.msra.mxu0 0.0
  %147 = vmatprep.subr.mxu0 0.0
  %148 = vmatpush1.xpose.msra.mxu0 0.0
  %149 = vmatprep.subr.mxu0 0.0
  %150 = vmatpush1.xpose.msra.mxu0 0.0
  %151 = vmatprep.subr.mxu0 0.0
  %152 = vmatpush1.xpose.msra.mxu0 0.0
  %153 = vmatprep.subr.mxu0 0.0
  %154 = vmatpush1.xpose.msra.mxu0 0.0
  %155 = vmatprep.subr.mxu0 0.0
  %156 = vmatpush1.xpose.msra.mxu0 0.0
  %157 = vmatprep.subr.mxu0 0.0
  %158 = vmatpush1.xpose.msra.mxu0 0.0
  %159 = vmatprep.subr.mxu0 0.0
  %160 = vmatpush1.xpose.msra.mxu0 0.0
  %161 = vmatprep.subr.mxu0 0.0
  %162 = vmatpush1.xpose.msra.mxu0 0.0
  %163 = vmatprep.subr.mxu0 0.0
  %164 = vmatpush1.xpose.msra.mxu0 0.0
  %165 = vmatprep.subr.mxu0 0.0
  %166 = vmatpush1.xpose.msra.mxu0 0.0
  %167 = vmatprep.subr.mxu0 0.0
  %168 = vmatpush1.xpose.msra.mxu0 0.0
  %169 = vmatprep.subr.mxu0 0.0
  %170 = vmatpush1.xpose.msra.mxu0 0.0
  %171 = vmatprep.subr.mxu0 0.0
  %172 = vmatpush1.xpose.msra.mxu0 0.0
  %173 = vmatprep.subr.mxu0 0.0
  %174 = vmatpush1.xpose.msra.mxu0 0.0
  %175 = vmatprep.subr.mxu0 0.0
  %176 = vmatpush1.xpose.msra.mxu0 0.0
  %177 = vmatprep.subr.mxu0 0.0
  %178 = vmatpush1.xpose.msra.mxu0 0.0
  %179 = vmatprep.subr.mxu0 0.0
  %180 = vmatpush1.xpose.msra.mxu0 0.0
  %181 = vmatprep.subr.mxu0 0.0
  %182 = vmatpush1.xpose.msra.mxu0 0.0
  %183 = vmatprep.subr.mxu0 0.0
  %184 = vmatpush1.xpose.msra.mxu0 0.0
  %185 = vmatprep.subr.mxu0 0.0
  %186 = vmatpush1.xpose.msra.mxu0 0.0
  %187 = vmatprep.subr.mxu0 0.0
  %188 = vmatpush1.xpose.msra.mxu0 0.0
  %189 = vmatprep.subr.mxu0 0.0
  %190 = vmatpush1.xpose.msra.mxu0 0.0
  %191 = vmatprep.mubr.f32.mxu0 0.0
  %192 = vmatmul.mubr.f32.gmra.mrb[0].mxu0 %v123
  %v193 = vpop.f32.mrb[0].mxu0
  %v194 = vadd.f32 %v119, %v193
  %v195 = vpop.f32.mrb[0].mxu0
  %196 = vdwg.mxu0
  %v197 = vmul.f32 %v18, %v194
  %vm198 = vcmask 15360
  %v199 = vsel %vm198, %v197, 0.0
  %200 = vadd.xlane.f32.xlu0 %v199
  %v201 = vpop.xlane.xlu0 %200
  %v202 = vmul.f32 %v201, %v201
  %v203 = vld [vmem:[%s0] sm:$0xff]
  %v204 = vld [vmem:[%s0 + $0x8] sm:$0xff]
  %v205 = vld [vmem:[%s0 + $0x10] sm:$0xff]
  %v206 = vld [vmem:[%s0 + $0x18] sm:$0xff]
  %v207 = vld [vmem:[%s0 + $0x20] sm:$0xff]
  %v208 = vld [vmem:[%s0 + $0x28] sm:$0xff]
  %v209 = vld [vmem:[%s0 + $0x30] sm:$0xff]
  %v210 = vld [vmem:[%s0 + $0x38] sm:$0xff]
  %v211 = vlaneseq
  %v212 = vshrl.u32 %v211, 7
  %v213 = vsub.s32 0, %v212
  %v214 = vrot.slane %v17, %v213
  %v215 = vmul.f32 %v203, %v214
  %v216 = vmul.f32 %v204, %v214
  %v217 = vmul.f32 %v205, %v214
  %v218 = vmul.f32 %v206, %v214
  %v219 = vmul.f32 %v207, %v214
  %v220 = vmul.f32 %v208, %v214
  %v221 = vmul.f32 %v209, %v214
  %v222 = vmul.f32 %v210, %v214
  %231 = vrot.lane.b32.xlu0 %v215, 96
  %v232 = vpop.permute.xlu0 %231
  %233 = vrot.lane.b32.xlu0 %v216, 96
  %v234 = vpop.permute.xlu0 %233
  %235 = vrot.lane.b32.xlu0 %v217, 96
  %v236 = vpop.permute.xlu0 %235
  %237 = vrot.lane.b32.xlu0 %v218, 96
  %v238 = vpop.permute.xlu0 %237
  %239 = vrot.lane.b32.xlu0 %v219, 96
  %v240 = vpop.permute.xlu0 %239
  %241 = vrot.lane.b32.xlu0 %v220, 96
  %v242 = vpop.permute.xlu0 %241
  %243 = vrot.lane.b32.xlu0 %v221, 96
  %v244 = vpop.permute.xlu0 %243
  %245 = vrot.lane.b32.xlu0 %v222, 96
  %v246 = vpop.permute.xlu0 %245
  %v255 = vsub.f32 %v215, %v232
  %v256 = vsub.f32 %v216, %v234
  %v257 = vsub.f32 %v217, %v236
  %v258 = vsub.f32 %v218, %v238
  %v259 = vsub.f32 %v219, %v240
  %v260 = vsub.f32 %v220, %v242
  %v261 = vsub.f32 %v221, %v244
  %v262 = vsub.f32 %v222, %v246
  %264 = vrot.lane.b32.xlu0 %v214, 32
  %v265 = vpop.permute.xlu0 %264
  %v267 = vmul.f32 %v203, %v265
  %v268 = vmul.f32 %v204, %v265
  %v269 = vmul.f32 %v205, %v265
  %v270 = vmul.f32 %v206, %v265
  %v271 = vmul.f32 %v207, %v265
  %v272 = vmul.f32 %v208, %v265
  %v273 = vmul.f32 %v209, %v265
  %v274 = vmul.f32 %v210, %v265
  %275 = vrot.lane.b32.xlu0 %v214, 96
  %v276 = vpop.permute.xlu0 %275
  %v278 = vmul.f32 %v203, %v276
  %v279 = vmul.f32 %v204, %v276
  %v280 = vmul.f32 %v205, %v276
  %v281 = vmul.f32 %v206, %v276
  %v282 = vmul.f32 %v207, %v276
  %v283 = vmul.f32 %v208, %v276
  %v284 = vmul.f32 %v209, %v276
  %v285 = vmul.f32 %v210, %v276
  %294 = vrot.lane.b32.xlu0 %v278, 32
  %v295 = vpop.permute.xlu0 %294
  %296 = vrot.lane.b32.xlu0 %v279, 32
  %v297 = vpop.permute.xlu0 %296
  %298 = vrot.lane.b32.xlu0 %v280, 32
  %v299 = vpop.permute.xlu0 %298
  %300 = vrot.lane.b32.xlu0 %v281, 32
  %v301 = vpop.permute.xlu0 %300
  %302 = vrot.lane.b32.xlu0 %v282, 32
  %v303 = vpop.permute.xlu0 %302
  %304 = vrot.lane.b32.xlu0 %v283, 32
  %v305 = vpop.permute.xlu0 %304
  %306 = vrot.lane.b32.xlu0 %v284, 32
  %v307 = vpop.permute.xlu0 %306
  %308 = vrot.lane.b32.xlu0 %v285, 32
  %v309 = vpop.permute.xlu0 %308
  %v318 = vadd.f32 %v267, %v295
  %v319 = vadd.f32 %v268, %v297
  %v320 = vadd.f32 %v269, %v299
  %v321 = vadd.f32 %v270, %v301
  %v322 = vadd.f32 %v271, %v303
  %v323 = vadd.f32 %v272, %v305
  %v324 = vadd.f32 %v273, %v307
  %v325 = vadd.f32 %v274, %v309
  %v326 = vsel %vm46, %v255, %v318
  %v327 = vsel %vm46, %v256, %v319
  %v328 = vsel %vm46, %v257, %v320
  %v329 = vsel %vm46, %v258, %v321
  %v330 = vsel %vm46, %v259, %v322
  %v331 = vsel %vm46, %v260, %v323
  %v332 = vsel %vm46, %v261, %v324
  %v333 = vsel %vm46, %v262, %v325
  %334 = vxpose.xlu0.b32.start [1/16] %v326, 128
  %335 = vxpose.xlu0.b32.cont [2/16] %v327, 128
  %336 = vxpose.xlu0.b32.cont [3/16] %v328, 128
  %337 = vxpose.xlu0.b32.cont [4/16] %v329, 128
  %338 = vxpose.xlu0.b32.cont [5/16] %v330, 128
  %339 = vxpose.xlu0.b32.cont [6/16] %v331, 128
  %340 = vxpose.xlu0.b32.cont [7/16] %v332, 128
  %341 = vxpose.xlu0.b32.cont [8/16] %v333, 128
  %342 = vxpose.xlu0.b32.cont [9/16] 0.0, 128
  %343 = vxpose.xlu0.b32.cont [10/16] 0.0, 128
  %344 = vxpose.xlu0.b32.cont [11/16] 0.0, 128
  %345 = vxpose.xlu0.b32.cont [12/16] 0.0, 128
  %346 = vxpose.xlu0.b32.cont [13/16] 0.0, 128
  %347 = vxpose.xlu0.b32.cont [14/16] 0.0, 128
  %348 = vxpose.xlu0.b32.cont [15/16] 0.0, 128
  %349 = vxpose.xlu0.b32.end [16/16] 0.0, 128
  %v350 = vpop.trf.xlu0
  %v351 = vpop.trf.xlu0
  %v352 = vpop.trf.xlu0
  %v353 = vpop.trf.xlu0
  %v354 = vpop.trf.xlu0
  %v355 = vpop.trf.xlu0
  %v356 = vpop.trf.xlu0
  %v357 = vpop.trf.xlu0
  %v358 = vpop.trf.xlu0
  %v359 = vpop.trf.xlu0
  %v360 = vpop.trf.xlu0
  %v361 = vpop.trf.xlu0
  %v362 = vpop.trf.xlu0
  %v363 = vpop.trf.xlu0
  %v364 = vpop.trf.xlu0
  %v365 = vpop.trf.xlu0
  %vm366 = vcmask 523264
  %v368 = vsel %vm366, %v350, 0
  %v371 = vsel %vm366, %v351, 0
  %v374 = vsel %vm366, %v352, 0
  %v377 = vsel %vm366, %v353, 0
  %v380 = vsel %vm366, %v354, 0
  %v383 = vsel %vm366, %v355, 0
  %v386 = vsel %vm366, %v356, 0
  %v389 = vsel %vm366, %v357, 0
  %391 = vmatprep.subr.mxu0 0.0
  %392 = vmatpush1.msra.mxu0 %v326
  %393 = vmatprep.subr.mxu0 0.0
  %394 = vmatpush1.msra.mxu0 %v327
  %395 = vmatprep.subr.mxu0 0.0
  %396 = vmatpush1.msra.mxu0 %v328
  %397 = vmatprep.subr.mxu0 0.0
  %398 = vmatpush1.msra.mxu0 %v329
  %399 = vmatprep.subr.mxu0 0.0
  %400 = vmatpush1.msra.mxu0 %v330
  %401 = vmatprep.subr.mxu0 0.0
  %402 = vmatpush1.msra.mxu0 %v331
  %403 = vmatprep.subr.mxu0 0.0
  %404 = vmatpush1.msra.mxu0 %v332
  %405 = vmatprep.subr.mxu0 0.0
  %406 = vmatpush1.msra.mxu0 %v333
  %407 = vmatprep.subr.mxu0 0.0
  %408 = vmatpush1.msra.mxu0 0.0
  %409 = vmatprep.subr.mxu0 0.0
  %410 = vmatpush1.msra.mxu0 0.0
  %411 = vmatprep.subr.mxu0 0.0
  %412 = vmatpush1.msra.mxu0 0.0
  %413 = vmatprep.subr.mxu0 0.0
  %414 = vmatpush1.msra.mxu0 0.0
  %415 = vmatprep.subr.mxu0 0.0
  %416 = vmatpush1.msra.mxu0 0.0
  %417 = vmatprep.subr.mxu0 0.0
  %418 = vmatpush1.msra.mxu0 0.0
  %419 = vmatprep.subr.mxu0 0.0
  %420 = vmatpush1.msra.mxu0 0.0
  %421 = vmatprep.subr.mxu0 0.0
  %422 = vmatpush1.msra.mxu0 0.0
  %423 = vmatprep.subr.mxu0 0.0
  %424 = vmatpush1.msra.mxu0 0.0
  %425 = vmatprep.subr.mxu0 0.0
  %426 = vmatpush1.msra.mxu0 0.0
  %427 = vmatprep.subr.mxu0 0.0
  %428 = vmatpush1.msra.mxu0 0.0
  %429 = vmatprep.subr.mxu0 0.0
  %430 = vmatpush1.msra.mxu0 0.0
  %431 = vmatprep.subr.mxu0 0.0
  %432 = vmatpush1.msra.mxu0 0.0
  %433 = vmatprep.subr.mxu0 0.0
  %434 = vmatpush1.msra.mxu0 0.0
  %435 = vmatprep.subr.mxu0 0.0
  %436 = vmatpush1.msra.mxu0 0.0
  %437 = vmatprep.subr.mxu0 0.0
  %438 = vmatpush1.msra.mxu0 0.0
  %439 = vmatprep.subr.mxu0 0.0
  %440 = vmatpush1.msra.mxu0 0.0
  %441 = vmatprep.subr.mxu0 0.0
  %442 = vmatpush1.msra.mxu0 0.0
  %443 = vmatprep.subr.mxu0 0.0
  %444 = vmatpush1.msra.mxu0 0.0
  %445 = vmatprep.subr.mxu0 0.0
  %446 = vmatpush1.msra.mxu0 0.0
  %447 = vmatprep.subr.mxu0 0.0
  %448 = vmatpush1.msra.mxu0 0.0
  %449 = vmatprep.subr.mxu0 0.0
  %450 = vmatpush1.msra.mxu0 0.0
  %451 = vmatprep.subr.mxu0 0.0
  %452 = vmatpush1.msra.mxu0 0.0
  %453 = vmatprep.subr.mxu0 0.0
  %454 = vmatpush1.msra.mxu0 0.0
  %455 = vmatprep.mubr.f32.mxu0 0.0
  %456 = vmatmul.mubr.f32.gmra.mrb[0].mxu0 %v368
  %v457 = vpop.f32.mrb[0].mxu0
  %v458 = vadd.f32 0.0, %v457
  %v459 = vpop.f32.mrb[0].mxu0
  %460 = vmatprep.mubr.f32.mxu0 0.0
  %461 = vmatmul.mubr.f32.gmra.mrb[0].mxu0 %v371
  %v462 = vpop.f32.mrb[0].mxu0
  %v463 = vadd.f32 0.0, %v462
  %v464 = vpop.f32.mrb[0].mxu0
  %465 = vmatprep.mubr.f32.mxu0 0.0
  %466 = vmatmul.mubr.f32.gmra.mrb[0].mxu0 %v374
  %v467 = vpop.f32.mrb[0].mxu0
  %v468 = vadd.f32 0.0, %v467
  %v469 = vpop.f32.mrb[0].mxu0
  %470 = vmatprep.mubr.f32.mxu0 0.0
  %471 = vmatmul.mubr.f32.gmra.mrb[0].mxu0 %v377
  %v472 = vpop.f32.mrb[0].mxu0
  %v473 = vadd.f32 0.0, %v472
  %v474 = vpop.f32.mrb[0].mxu0
  %475 = vmatprep.mubr.f32.mxu0 0.0
  %476 = vmatmul.mubr.f32.gmra.mrb[0].mxu0 %v380
  %v477 = vpop.f32.mrb[0].mxu0
  %v478 = vadd.f32 0.0, %v477
  %v479 = vpop.f32.mrb[0].mxu0
  %480 = vmatprep.mubr.f32.mxu0 0.0
  %481 = vmatmul.mubr.f32.gmra.mrb[0].mxu0 %v383
  %v482 = vpop.f32.mrb[0].mxu0
  %v483 = vadd.f32 0.0, %v482
  %v484 = vpop.f32.mrb[0].mxu0
  %485 = vmatprep.mubr.f32.mxu0 0.0
  %486 = vmatmul.mubr.f32.gmra.mrb[0].mxu0 %v386
  %v487 = vpop.f32.mrb[0].mxu0
  %v488 = vadd.f32 0.0, %v487
  %v489 = vpop.f32.mrb[0].mxu0
  %490 = vmatprep.mubr.f32.mxu0 0.0
  %491 = vmatmul.mubr.f32.gmra.mrb[0].mxu0 %v389
  %v492 = vpop.f32.mrb[0].mxu0
  %v493 = vadd.f32 0.0, %v492
  %v494 = vpop.f32.mrb[0].mxu0
  %495 = vdwg.mxu0
  %504 = vrot.lane.b32.xlu0 %v203, 64
  %v505 = vpop.permute.xlu0 %504
  %506 = vrot.lane.b32.xlu0 %v204, 64
  %v507 = vpop.permute.xlu0 %506
  %508 = vrot.lane.b32.xlu0 %v205, 64
  %v509 = vpop.permute.xlu0 %508
  %510 = vrot.lane.b32.xlu0 %v206, 64
  %v511 = vpop.permute.xlu0 %510
  %512 = vrot.lane.b32.xlu0 %v207, 64
  %v513 = vpop.permute.xlu0 %512
  %514 = vrot.lane.b32.xlu0 %v208, 64
  %v515 = vpop.permute.xlu0 %514
  %516 = vrot.lane.b32.xlu0 %v209, 64
  %v517 = vpop.permute.xlu0 %516
  %518 = vrot.lane.b32.xlu0 %v210, 64
  %v519 = vpop.permute.xlu0 %518
  %528 = vxpose.xlu0.b32.start [1/16] %v505, 128
  %529 = vxpose.xlu0.b32.cont [2/16] %v507, 128
  %530 = vxpose.xlu0.b32.cont [3/16] %v509, 128
  %531 = vxpose.xlu0.b32.cont [4/16] %v511, 128
  %532 = vxpose.xlu0.b32.cont [5/16] %v513, 128
  %533 = vxpose.xlu0.b32.cont [6/16] %v515, 128
  %534 = vxpose.xlu0.b32.cont [7/16] %v517, 128
  %535 = vxpose.xlu0.b32.cont [8/16] %v519, 128
  %536 = vxpose.xlu0.b32.cont [9/16] 0.0, 128
  %537 = vxpose.xlu0.b32.cont [10/16] 0.0, 128
  %538 = vxpose.xlu0.b32.cont [11/16] 0.0, 128
  %539 = vxpose.xlu0.b32.cont [12/16] 0.0, 128
  %540 = vxpose.xlu0.b32.cont [13/16] 0.0, 128
  %541 = vxpose.xlu0.b32.cont [14/16] 0.0, 128
  %542 = vxpose.xlu0.b32.cont [15/16] 0.0, 128
  %543 = vxpose.xlu0.b32.end [16/16] 0.0, 128
  %v544 = vpop.trf.xlu0
  %v545 = vpop.trf.xlu0
  %v546 = vpop.trf.xlu0
  %v547 = vpop.trf.xlu0
  %v548 = vpop.trf.xlu0
  %v549 = vpop.trf.xlu0
  %v550 = vpop.trf.xlu0
  %v551 = vpop.trf.xlu0
  %v552 = vpop.trf.xlu0
  %v553 = vpop.trf.xlu0
  %v554 = vpop.trf.xlu0
  %v555 = vpop.trf.xlu0
  %v556 = vpop.trf.xlu0
  %v557 = vpop.trf.xlu0
  %v558 = vpop.trf.xlu0
  %v559 = vpop.trf.xlu0
  %v561 = vsel %vm366, %v544, 0
  %v564 = vsel %vm366, %v545, 0
  %v567 = vsel %vm366, %v546, 0
  %v570 = vsel %vm366, %v547, 0
  %v573 = vsel %vm366, %v548, 0
  %v576 = vsel %vm366, %v549, 0
  %v579 = vsel %vm366, %v550, 0
  %v582 = vsel %vm366, %v551, 0
  %584 = vmatprep.subr.mxu0 0.0
  %585 = vmatpush1.msra.mxu0 %v505
  %586 = vmatprep.subr.mxu0 0.0
  %587 = vmatpush1.msra.mxu0 %v507
  %588 = vmatprep.subr.mxu0 0.0
  %589 = vmatpush1.msra.mxu0 %v509
  %590 = vmatprep.subr.mxu0 0.0
  %591 = vmatpush1.msra.mxu0 %v511
  %592 = vmatprep.subr.mxu0 0.0
  %593 = vmatpush1.msra.mxu0 %v513
  %594 = vmatprep.subr.mxu0 0.0
  %595 = vmatpush1.msra.mxu0 %v515
  %596 = vmatprep.subr.mxu0 0.0
  %597 = vmatpush1.msra.mxu0 %v517
  %598 = vmatprep.subr.mxu0 0.0
  %599 = vmatpush1.msra.mxu0 %v519
  %600 = vmatprep.subr.mxu0 0.0
  %601 = vmatpush1.msra.mxu0 0.0
  %602 = vmatprep.subr.mxu0 0.0
  %603 = vmatpush1.msra.mxu0 0.0
  %604 = vmatprep.subr.mxu0 0.0
  %605 = vmatpush1.msra.mxu0 0.0
  %606 = vmatprep.subr.mxu0 0.0
  %607 = vmatpush1.msra.mxu0 0.0
  %608 = vmatprep.subr.mxu0 0.0
  %609 = vmatpush1.msra.mxu0 0.0
  %610 = vmatprep.subr.mxu0 0.0
  %611 = vmatpush1.msra.mxu0 0.0
  %612 = vmatprep.subr.mxu0 0.0
  %613 = vmatpush1.msra.mxu0 0.0
  %614 = vmatprep.subr.mxu0 0.0
  %615 = vmatpush1.msra.mxu0 0.0
  %616 = vmatprep.subr.mxu0 0.0
  %617 = vmatpush1.msra.mxu0 0.0
  %618 = vmatprep.subr.mxu0 0.0
  %619 = vmatpush1.msra.mxu0 0.0
  %620 = vmatprep.subr.mxu0 0.0
  %621 = vmatpush1.msra.mxu0 0.0
  %622 = vmatprep.subr.mxu0 0.0
  %623 = vmatpush1.msra.mxu0 0.0
  %624 = vmatprep.subr.mxu0 0.0
  %625 = vmatpush1.msra.mxu0 0.0
  %626 = vmatprep.subr.mxu0 0.0
  %627 = vmatpush1.msra.mxu0 0.0
  %628 = vmatprep.subr.mxu0 0.0
  %629 = vmatpush1.msra.mxu0 0.0
  %630 = vmatprep.subr.mxu0 0.0
  %631 = vmatpush1.msra.mxu0 0.0
  %632 = vmatprep.subr.mxu0 0.0
  %633 = vmatpush1.msra.mxu0 0.0
  %634 = vmatprep.subr.mxu0 0.0
  %635 = vmatpush1.msra.mxu0 0.0
  %636 = vmatprep.subr.mxu0 0.0
  %637 = vmatpush1.msra.mxu0 0.0
  %638 = vmatprep.subr.mxu0 0.0
  %639 = vmatpush1.msra.mxu0 0.0
  %640 = vmatprep.subr.mxu0 0.0
  %641 = vmatpush1.msra.mxu0 0.0
  %642 = vmatprep.subr.mxu0 0.0
  %643 = vmatpush1.msra.mxu0 0.0
  %644 = vmatprep.subr.mxu0 0.0
  %645 = vmatpush1.msra.mxu0 0.0
  %646 = vmatprep.subr.mxu0 0.0
  %647 = vmatpush1.msra.mxu0 0.0
  %648 = vmatprep.mubr.f32.mxu0 0.0
  %649 = vmatmul.mubr.f32.gmra.mrb[0].mxu0 %v561
  %v650 = vpop.f32.mrb[0].mxu0
  %v651 = vadd.f32 0.0, %v650
  %v652 = vpop.f32.mrb[0].mxu0
  %653 = vmatprep.mubr.f32.mxu0 0.0
  %654 = vmatmul.mubr.f32.gmra.mrb[0].mxu0 %v564
  %v655 = vpop.f32.mrb[0].mxu0
  %v656 = vadd.f32 0.0, %v655
  %v657 = vpop.f32.mrb[0].mxu0
  %658 = vmatprep.mubr.f32.mxu0 0.0
  %659 = vmatmul.mubr.f32.gmra.mrb[0].mxu0 %v567
  %v660 = vpop.f32.mrb[0].mxu0
  %v661 = vadd.f32 0.0, %v660
  %v662 = vpop.f32.mrb[0].mxu0
  %663 = vmatprep.mubr.f32.mxu0 0.0
  %664 = vmatmul.mubr.f32.gmra.mrb[0].mxu0 %v570
  %v665 = vpop.f32.mrb[0].mxu0
  %v666 = vadd.f32 0.0, %v665
  %v667 = vpop.f32.mrb[0].mxu0
  %668 = vmatprep.mubr.f32.mxu0 0.0
  %669 = vmatmul.mubr.f32.gmra.mrb[0].mxu0 %v573
  %v670 = vpop.f32.mrb[0].mxu0
  %v671 = vadd.f32 0.0, %v670
  %v672 = vpop.f32.mrb[0].mxu0
  %673 = vmatprep.mubr.f32.mxu0 0.0
  %674 = vmatmul.mubr.f32.gmra.mrb[0].mxu0 %v576
  %v675 = vpop.f32.mrb[0].mxu0
  %v676 = vadd.f32 0.0, %v675
  %v677 = vpop.f32.mrb[0].mxu0
  %678 = vmatprep.mubr.f32.mxu0 0.0
  %679 = vmatmul.mubr.f32.gmra.mrb[0].mxu0 %v579
  %v680 = vpop.f32.mrb[0].mxu0
  %v681 = vadd.f32 0.0, %v680
  %v682 = vpop.f32.mrb[0].mxu0
  %683 = vmatprep.mubr.f32.mxu0 0.0
  %684 = vmatmul.mubr.f32.gmra.mrb[0].mxu0 %v582
  %v685 = vpop.f32.mrb[0].mxu0
  %v686 = vadd.f32 0.0, %v685
  %v687 = vpop.f32.mrb[0].mxu0
  %688 = vdwg.mxu0
  %v689 = vmul.f32 %v458, %v651
  %v690 = vmul.f32 %v463, %v656
  %v691 = vmul.f32 %v468, %v661
  %v692 = vmul.f32 %v473, %v666
  %v693 = vmul.f32 %v478, %v671
  %v694 = vmul.f32 %v483, %v676
  %v695 = vmul.f32 %v488, %v681
  %v696 = vmul.f32 %v493, %v686
  %v697 = vsel %vm366, %v689, 0.0
  %698 = vadd.xlane.f32.xlu0 %v697
  %v699 = vpop.xlane.xlu0 %698
  %v700 = vsel %vm366, %v690, 0.0
  %701 = vadd.xlane.f32.xlu0 %v700
  %v702 = vpop.xlane.xlu0 %701
  %v703 = vsel %vm366, %v691, 0.0
  %704 = vadd.xlane.f32.xlu0 %v703
  %v705 = vpop.xlane.xlu0 %704
  %v706 = vsel %vm366, %v692, 0.0
  %707 = vadd.xlane.f32.xlu0 %v706
  %v708 = vpop.xlane.xlu0 %707
  %v709 = vsel %vm366, %v693, 0.0
  %710 = vadd.xlane.f32.xlu0 %v709
  %v711 = vpop.xlane.xlu0 %710
  %v712 = vsel %vm366, %v694, 0.0
  %713 = vadd.xlane.f32.xlu0 %v712
  %v714 = vpop.xlane.xlu0 %713
  %v715 = vsel %vm366, %v695, 0.0
  %716 = vadd.xlane.f32.xlu0 %v715
  %v717 = vpop.xlane.xlu0 %716
  %v718 = vsel %vm366, %v696, 0.0
  %719 = vadd.xlane.f32.xlu0 %v718
  %v720 = vpop.xlane.xlu0 %719
  %v721 = vadd.f32 %v699, %v702
  %v722 = vadd.f32 %v721, %v705
  %v723 = vadd.f32 %v722, %v708
  %v724 = vadd.f32 %v723, %v711
  %v725 = vadd.f32 %v724, %v714
  %v726 = vadd.f32 %v725, %v717
  %v727 = vadd.f32 %v726, %v720
  %v728 = vrot.slane %v727, 4
  %v729 = vadd.f32 %v727, %v728
  %v730 = vrot.slane %v729, 2
  %v731 = vadd.f32 %v729, %v730
  %v732 = vrot.slane %v731, 1
  %v733 = vadd.f32 %v731, %v732
  %v734 = vmul.f32 %v18, %v733
  %v735 = vadd.f32 %v734, 0.0
  %v736 = vmul.f32 %v18, 0.00032552084
  %v737 = vadd.f32 %v736, 0.0
  %s738 = scalar_lea.vmem %s0, 64
  %v739 = vld [vmem:[%s738] sm:$0xff]
  %v740 = vld [vmem:[%s738 + $0x8] sm:$0xff]
  %v741 = vld [vmem:[%s738 + $0x10] sm:$0xff]
  %v742 = vld [vmem:[%s738 + $0x18] sm:$0xff]
  %v743 = vld [vmem:[%s738 + $0x20] sm:$0xff]
  %v744 = vld [vmem:[%s738 + $0x28] sm:$0xff]
  %v745 = vld [vmem:[%s738 + $0x30] sm:$0xff]
  %v746 = vld [vmem:[%s738 + $0x38] sm:$0xff]
  %v747 = vlaneseq
  %v748 = vshrl.u32 %v747, 7
  %v749 = vsub.s32 1, %v748
  %v750 = vrot.slane %v17, %v749
  %v751 = vmul.f32 %v739, %v750
  %v752 = vmul.f32 %v740, %v750
  %v753 = vmul.f32 %v741, %v750
  %v754 = vmul.f32 %v742, %v750
  %v755 = vmul.f32 %v743, %v750
  %v756 = vmul.f32 %v744, %v750
  %v757 = vmul.f32 %v745, %v750
  %v758 = vmul.f32 %v746, %v750
  %767 = vrot.lane.b32.xlu0 %v751, 96
  %v768 = vpop.permute.xlu0 %767
  %769 = vrot.lane.b32.xlu0 %v752, 96
  %v770 = vpop.permute.xlu0 %769
  %771 = vrot.lane.b32.xlu0 %v753, 96
  %v772 = vpop.permute.xlu0 %771
  %773 = vrot.lane.b32.xlu0 %v754, 96
  %v774 = vpop.permute.xlu0 %773
  %775 = vrot.lane.b32.xlu0 %v755, 96
  %v776 = vpop.permute.xlu0 %775
  %777 = vrot.lane.b32.xlu0 %v756, 96
  %v778 = vpop.permute.xlu0 %777
  %779 = vrot.lane.b32.xlu0 %v757, 96
  %v780 = vpop.permute.xlu0 %779
  %781 = vrot.lane.b32.xlu0 %v758, 96
  %v782 = vpop.permute.xlu0 %781
  %v791 = vsub.f32 %v751, %v768
  %v792 = vsub.f32 %v752, %v770
  %v793 = vsub.f32 %v753, %v772
  %v794 = vsub.f32 %v754, %v774
  %v795 = vsub.f32 %v755, %v776
  %v796 = vsub.f32 %v756, %v778
  %v797 = vsub.f32 %v757, %v780
  %v798 = vsub.f32 %v758, %v782
  %800 = vrot.lane.b32.xlu0 %v750, 32
  %v801 = vpop.permute.xlu0 %800
  %v803 = vmul.f32 %v739, %v801
  %v804 = vmul.f32 %v740, %v801
  %v805 = vmul.f32 %v741, %v801
  %v806 = vmul.f32 %v742, %v801
  %v807 = vmul.f32 %v743, %v801
  %v808 = vmul.f32 %v744, %v801
  %v809 = vmul.f32 %v745, %v801
  %v810 = vmul.f32 %v746, %v801
  %811 = vrot.lane.b32.xlu0 %v750, 96
  %v812 = vpop.permute.xlu0 %811
  %v814 = vmul.f32 %v739, %v812
  %v815 = vmul.f32 %v740, %v812
  %v816 = vmul.f32 %v741, %v812
  %v817 = vmul.f32 %v742, %v812
  %v818 = vmul.f32 %v743, %v812
  %v819 = vmul.f32 %v744, %v812
  %v820 = vmul.f32 %v745, %v812
  %v821 = vmul.f32 %v746, %v812
  %830 = vrot.lane.b32.xlu0 %v814, 32
  %v831 = vpop.permute.xlu0 %830
  %832 = vrot.lane.b32.xlu0 %v815, 32
  %v833 = vpop.permute.xlu0 %832
  %834 = vrot.lane.b32.xlu0 %v816, 32
  %v835 = vpop.permute.xlu0 %834
  %836 = vrot.lane.b32.xlu0 %v817, 32
  %v837 = vpop.permute.xlu0 %836
  %838 = vrot.lane.b32.xlu0 %v818, 32
  %v839 = vpop.permute.xlu0 %838
  %840 = vrot.lane.b32.xlu0 %v819, 32
  %v841 = vpop.permute.xlu0 %840
  %842 = vrot.lane.b32.xlu0 %v820, 32
  %v843 = vpop.permute.xlu0 %842
  %844 = vrot.lane.b32.xlu0 %v821, 32
  %v845 = vpop.permute.xlu0 %844
  %v854 = vadd.f32 %v803, %v831
  %v855 = vadd.f32 %v804, %v833
  %v856 = vadd.f32 %v805, %v835
  %v857 = vadd.f32 %v806, %v837
  %v858 = vadd.f32 %v807, %v839
  %v859 = vadd.f32 %v808, %v841
  %v860 = vadd.f32 %v809, %v843
  %v861 = vadd.f32 %v810, %v845
  %v862 = vsel %vm46, %v791, %v854
  %v863 = vsel %vm46, %v792, %v855
  %v864 = vsel %vm46, %v793, %v856
  %v865 = vsel %vm46, %v794, %v857
  %v866 = vsel %vm46, %v795, %v858
  %v867 = vsel %vm46, %v796, %v859
  %v868 = vsel %vm46, %v797, %v860
  %v869 = vsel %vm46, %v798, %v861
  %870 = vxpose.xlu0.b32.start [1/16] %v862, 128
  %871 = vxpose.xlu0.b32.cont [2/16] %v863, 128
  %872 = vxpose.xlu0.b32.cont [3/16] %v864, 128
  %873 = vxpose.xlu0.b32.cont [4/16] %v865, 128
  %874 = vxpose.xlu0.b32.cont [5/16] %v866, 128
  %875 = vxpose.xlu0.b32.cont [6/16] %v867, 128
  %876 = vxpose.xlu0.b32.cont [7/16] %v868, 128
  %877 = vxpose.xlu0.b32.cont [8/16] %v869, 128
  %878 = vxpose.xlu0.b32.cont [9/16] 0.0, 128
  %879 = vxpose.xlu0.b32.cont [10/16] 0.0, 128
  %880 = vxpose.xlu0.b32.cont [11/16] 0.0, 128
  %881 = vxpose.xlu0.b32.cont [12/16] 0.0, 128
  %882 = vxpose.xlu0.b32.cont [13/16] 0.0, 128
  %883 = vxpose.xlu0.b32.cont [14/16] 0.0, 128
  %884 = vxpose.xlu0.b32.cont [15/16] 0.0, 128
  %885 = vxpose.xlu0.b32.end [16/16] 0.0, 128
  %v886 = vpop.trf.xlu0
  %v887 = vpop.trf.xlu0
  %v888 = vpop.trf.xlu0
  %v889 = vpop.trf.xlu0
  %v890 = vpop.trf.xlu0
  %v891 = vpop.trf.xlu0
  %v892 = vpop.trf.xlu0
  %v893 = vpop.trf.xlu0
  %v894 = vpop.trf.xlu0
  %v895 = vpop.trf.xlu0
  %v896 = vpop.trf.xlu0
  %v897 = vpop.trf.xlu0
  %v898 = vpop.trf.xlu0
  %v899 = vpop.trf.xlu0
  %v900 = vpop.trf.xlu0
  %v901 = vpop.trf.xlu0
  %v903 = vsel %vm366, %v886, 0
  %v906 = vsel %vm366, %v887, 0
  %v909 = vsel %vm366, %v888, 0
  %v912 = vsel %vm366, %v889, 0
  %v915 = vsel %vm366, %v890, 0
  %v918 = vsel %vm366, %v891, 0
  %v921 = vsel %vm366, %v892, 0
  %v924 = vsel %vm366, %v893, 0
  %926 = vmatprep.subr.mxu0 0.0
  %927 = vmatpush1.msra.mxu0 %v862
  %928 = vmatprep.subr.mxu0 0.0
  %929 = vmatpush1.msra.mxu0 %v863
  %930 = vmatprep.subr.mxu0 0.0
  %931 = vmatpush1.msra.mxu0 %v864
  %932 = vmatprep.subr.mxu0 0.0
  %933 = vmatpush1.msra.mxu0 %v865
  %934 = vmatprep.subr.mxu0 0.0
  %935 = vmatpush1.msra.mxu0 %v866
  %936 = vmatprep.subr.mxu0 0.0
  %937 = vmatpush1.msra.mxu0 %v867
  %938 = vmatprep.subr.mxu0 0.0
  %939 = vmatpush1.msra.mxu0 %v868
  %940 = vmatprep.subr.mxu0 0.0
  %941 = vmatpush1.msra.mxu0 %v869
  %942 = vmatprep.subr.mxu0 0.0
  %943 = vmatpush1.msra.mxu0 0.0
  %944 = vmatprep.subr.mxu0 0.0
  %945 = vmatpush1.msra.mxu0 0.0
  %946 = vmatprep.subr.mxu0 0.0
  %947 = vmatpush1.msra.mxu0 0.0
  %948 = vmatprep.subr.mxu0 0.0
  %949 = vmatpush1.msra.mxu0 0.0
  %950 = vmatprep.subr.mxu0 0.0
  %951 = vmatpush1.msra.mxu0 0.0
  %952 = vmatprep.subr.mxu0 0.0
  %953 = vmatpush1.msra.mxu0 0.0
  %954 = vmatprep.subr.mxu0 0.0
  %955 = vmatpush1.msra.mxu0 0.0
  %956 = vmatprep.subr.mxu0 0.0
  %957 = vmatpush1.msra.mxu0 0.0
  %958 = vmatprep.subr.mxu0 0.0
  %959 = vmatpush1.msra.mxu0 0.0
  %960 = vmatprep.subr.mxu0 0.0
  %961 = vmatpush1.msra.mxu0 0.0
  %962 = vmatprep.subr.mxu0 0.0
  %963 = vmatpush1.msra.mxu0 0.0
  %964 = vmatprep.subr.mxu0 0.0
  %965 = vmatpush1.msra.mxu0 0.0
  %966 = vmatprep.subr.mxu0 0.0
  %967 = vmatpush1.msra.mxu0 0.0
  %968 = vmatprep.subr.mxu0 0.0
  %969 = vmatpush1.msra.mxu0 0.0
  %970 = vmatprep.subr.mxu0 0.0
  %971 = vmatpush1.msra.mxu0 0.0
  %972 = vmatprep.subr.mxu0 0.0
  %973 = vmatpush1.msra.mxu0 0.0
  %974 = vmatprep.subr.mxu0 0.0
  %975 = vmatpush1.msra.mxu0 0.0
  %976 = vmatprep.subr.mxu0 0.0
  %977 = vmatpush1.msra.mxu0 0.0
  %978 = vmatprep.subr.mxu0 0.0
  %979 = vmatpush1.msra.mxu0 0.0
  %980 = vmatprep.subr.mxu0 0.0
  %981 = vmatpush1.msra.mxu0 0.0
  %982 = vmatprep.subr.mxu0 0.0
  %983 = vmatpush1.msra.mxu0 0.0
  %984 = vmatprep.subr.mxu0 0.0
  %985 = vmatpush1.msra.mxu0 0.0
  %986 = vmatprep.subr.mxu0 0.0
  %987 = vmatpush1.msra.mxu0 0.0
  %988 = vmatprep.subr.mxu0 0.0
  %989 = vmatpush1.msra.mxu0 0.0
  %990 = vmatprep.mubr.f32.mxu0 0.0
  %991 = vmatmul.mubr.f32.gmra.mrb[0].mxu0 %v903
  %v992 = vpop.f32.mrb[0].mxu0
  %v993 = vadd.f32 0.0, %v992
  %v994 = vpop.f32.mrb[0].mxu0
  %995 = vmatprep.mubr.f32.mxu0 0.0
  %996 = vmatmul.mubr.f32.gmra.mrb[0].mxu0 %v906
  %v997 = vpop.f32.mrb[0].mxu0
  %v998 = vadd.f32 0.0, %v997
  %v999 = vpop.f32.mrb[0].mxu0
  %1000 = vmatprep.mubr.f32.mxu0 0.0
  %1001 = vmatmul.mubr.f32.gmra.mrb[0].mxu0 %v909
  %v1002 = vpop.f32.mrb[0].mxu0
  %v1003 = vadd.f32 0.0, %v1002
  %v1004 = vpop.f32.mrb[0].mxu0
  %1005 = vmatprep.mubr.f32.mxu0 0.0
  %1006 = vmatmul.mubr.f32.gmra.mrb[0].mxu0 %v912
  %v1007 = vpop.f32.mrb[0].mxu0
  %v1008 = vadd.f32 0.0, %v1007
  %v1009 = vpop.f32.mrb[0].mxu0
  %1010 = vmatprep.mubr.f32.mxu0 0.0
  %1011 = vmatmul.mubr.f32.gmra.mrb[0].mxu0 %v915
  %v1012 = vpop.f32.mrb[0].mxu0
  %v1013 = vadd.f32 0.0, %v1012
  %v1014 = vpop.f32.mrb[0].mxu0
  %1015 = vmatprep.mubr.f32.mxu0 0.0
  %1016 = vmatmul.mubr.f32.gmra.mrb[0].mxu0 %v918
  %v1017 = vpop.f32.mrb[0].mxu0
  %v1018 = vadd.f32 0.0, %v1017
  %v1019 = vpop.f32.mrb[0].mxu0
  %1020 = vmatprep.mubr.f32.mxu0 0.0
  %1021 = vmatmul.mubr.f32.gmra.mrb[0].mxu0 %v921
  %v1022 = vpop.f32.mrb[0].mxu0
  %v1023 = vadd.f32 0.0, %v1022
  %v1024 = vpop.f32.mrb[0].mxu0
  %1025 = vmatprep.mubr.f32.mxu0 0.0
  %1026 = vmatmul.mubr.f32.gmra.mrb[0].mxu0 %v924
  %v1027 = vpop.f32.mrb[0].mxu0
  %v1028 = vadd.f32 0.0, %v1027
  %v1029 = vpop.f32.mrb[0].mxu0
  %1030 = vdwg.mxu0
  %1039 = vrot.lane.b32.xlu0 %v739, 64
  %v1040 = vpop.permute.xlu0 %1039
  %1041 = vrot.lane.b32.xlu0 %v740, 64
  %v1042 = vpop.permute.xlu0 %1041
  %1043 = vrot.lane.b32.xlu0 %v741, 64
  %v1044 = vpop.permute.xlu0 %1043
  %1045 = vrot.lane.b32.xlu0 %v742, 64
  %v1046 = vpop.permute.xlu0 %1045
  %1047 = vrot.lane.b32.xlu0 %v743, 64
  %v1048 = vpop.permute.xlu0 %1047
  %1049 = vrot.lane.b32.xlu0 %v744, 64
  %v1050 = vpop.permute.xlu0 %1049
  %1051 = vrot.lane.b32.xlu0 %v745, 64
  %v1052 = vpop.permute.xlu0 %1051
  %1053 = vrot.lane.b32.xlu0 %v746, 64
  %v1054 = vpop.permute.xlu0 %1053
  %1063 = vxpose.xlu0.b32.start [1/16] %v1040, 128
  %1064 = vxpose.xlu0.b32.cont [2/16] %v1042, 128
  %1065 = vxpose.xlu0.b32.cont [3/16] %v1044, 128
  %1066 = vxpose.xlu0.b32.cont [4/16] %v1046, 128
  %1067 = vxpose.xlu0.b32.cont [5/16] %v1048, 128
  %1068 = vxpose.xlu0.b32.cont [6/16] %v1050, 128
  %1069 = vxpose.xlu0.b32.cont [7/16] %v1052, 128
  %1070 = vxpose.xlu0.b32.cont [8/16] %v1054, 128
  %1071 = vxpose.xlu0.b32.cont [9/16] 0.0, 128
  %1072 = vxpose.xlu0.b32.cont [10/16] 0.0, 128
  %1073 = vxpose.xlu0.b32.cont [11/16] 0.0, 128
  %1074 = vxpose.xlu0.b32.cont [12/16] 0.0, 128
  %1075 = vxpose.xlu0.b32.cont [13/16] 0.0, 128
  %1076 = vxpose.xlu0.b32.cont [14/16] 0.0, 128
  %1077 = vxpose.xlu0.b32.cont [15/16] 0.0, 128
  %1078 = vxpose.xlu0.b32.end [16/16] 0.0, 128
  %v1079 = vpop.trf.xlu0
  %v1080 = vpop.trf.xlu0
  %v1081 = vpop.trf.xlu0
  %v1082 = vpop.trf.xlu0
  %v1083 = vpop.trf.xlu0
  %v1084 = vpop.trf.xlu0
  %v1085 = vpop.trf.xlu0
  %v1086 = vpop.trf.xlu0
  %v1087 = vpop.trf.xlu0
  %v1088 = vpop.trf.xlu0
  %v1089 = vpop.trf.xlu0
  %v1090 = vpop.trf.xlu0
  %v1091 = vpop.trf.xlu0
  %v1092 = vpop.trf.xlu0
  %v1093 = vpop.trf.xlu0
  %v1094 = vpop.trf.xlu0
  %v1096 = vsel %vm366, %v1079, 0
  %v1099 = vsel %vm366, %v1080, 0
  %v1102 = vsel %vm366, %v1081, 0
  %v1105 = vsel %vm366, %v1082, 0
  %v1108 = vsel %vm366, %v1083, 0
  %v1111 = vsel %vm366, %v1084, 0
  %v1114 = vsel %vm366, %v1085, 0
  %v1117 = vsel %vm366, %v1086, 0
  %1119 = vmatprep.subr.mxu0 0.0
  %1120 = vmatpush1.msra.mxu0 %v1040
  %1121 = vmatprep.subr.mxu0 0.0
  %1122 = vmatpush1.msra.mxu0 %v1042
  %1123 = vmatprep.subr.mxu0 0.0
  %1124 = vmatpush1.msra.mxu0 %v1044
  %1125 = vmatprep.subr.mxu0 0.0
  %1126 = vmatpush1.msra.mxu0 %v1046
  %1127 = vmatprep.subr.mxu0 0.0
  %1128 = vmatpush1.msra.mxu0 %v1048
  %1129 = vmatprep.subr.mxu0 0.0
  %1130 = vmatpush1.msra.mxu0 %v1050
  %1131 = vmatprep.subr.mxu0 0.0
  %1132 = vmatpush1.msra.mxu0 %v1052
  %1133 = vmatprep.subr.mxu0 0.0
  %1134 = vmatpush1.msra.mxu0 %v1054
  %1135 = vmatprep.subr.mxu0 0.0
  %1136 = vmatpush1.msra.mxu0 0.0
  %1137 = vmatprep.subr.mxu0 0.0
  %1138 = vmatpush1.msra.mxu0 0.0
  %1139 = vmatprep.subr.mxu0 0.0
  %1140 = vmatpush1.msra.mxu0 0.0
  %1141 = vmatprep.subr.mxu0 0.0
  %1142 = vmatpush1.msra.mxu0 0.0
  %1143 = vmatprep.subr.mxu0 0.0
  %1144 = vmatpush1.msra.mxu0 0.0
  %1145 = vmatprep.subr.mxu0 0.0
  %1146 = vmatpush1.msra.mxu0 0.0
  %1147 = vmatprep.subr.mxu0 0.0
  %1148 = vmatpush1.msra.mxu0 0.0
  %1149 = vmatprep.subr.mxu0 0.0
  %1150 = vmatpush1.msra.mxu0 0.0
  %1151 = vmatprep.subr.mxu0 0.0
  %1152 = vmatpush1.msra.mxu0 0.0
  %1153 = vmatprep.subr.mxu0 0.0
  %1154 = vmatpush1.msra.mxu0 0.0
  %1155 = vmatprep.subr.mxu0 0.0
  %1156 = vmatpush1.msra.mxu0 0.0
  %1157 = vmatprep.subr.mxu0 0.0
  %1158 = vmatpush1.msra.mxu0 0.0
  %1159 = vmatprep.subr.mxu0 0.0
  %1160 = vmatpush1.msra.mxu0 0.0
  %1161 = vmatprep.subr.mxu0 0.0
  %1162 = vmatpush1.msra.mxu0 0.0
  %1163 = vmatprep.subr.mxu0 0.0
  %1164 = vmatpush1.msra.mxu0 0.0
  %1165 = vmatprep.subr.mxu0 0.0
  %1166 = vmatpush1.msra.mxu0 0.0
  %1167 = vmatprep.subr.mxu0 0.0
  %1168 = vmatpush1.msra.mxu0 0.0
  %1169 = vmatprep.subr.mxu0 0.0
  %1170 = vmatpush1.msra.mxu0 0.0
  %1171 = vmatprep.subr.mxu0 0.0
  %1172 = vmatpush1.msra.mxu0 0.0
  %1173 = vmatprep.subr.mxu0 0.0
  %1174 = vmatpush1.msra.mxu0 0.0
  %1175 = vmatprep.subr.mxu0 0.0
  %1176 = vmatpush1.msra.mxu0 0.0
  %1177 = vmatprep.subr.mxu0 0.0
  %1178 = vmatpush1.msra.mxu0 0.0
  %1179 = vmatprep.subr.mxu0 0.0
  %1180 = vmatpush1.msra.mxu0 0.0
  %1181 = vmatprep.subr.mxu0 0.0
  %1182 = vmatpush1.msra.mxu0 0.0
  %1183 = vmatprep.mubr.f32.mxu0 0.0
  %1184 = vmatmul.mubr.f32.gmra.mrb[0].mxu0 %v1096
  %v1185 = vpop.f32.mrb[0].mxu0
  %v1186 = vadd.f32 0.0, %v1185
  %v1187 = vpop.f32.mrb[0].mxu0
  %1188 = vmatprep.mubr.f32.mxu0 0.0
  %1189 = vmatmul.mubr.f32.gmra.mrb[0].mxu0 %v1099
  %v1190 = vpop.f32.mrb[0].mxu0
  %v1191 = vadd.f32 0.0, %v1190
  %v1192 = vpop.f32.mrb[0].mxu0
  %1193 = vmatprep.mubr.f32.mxu0 0.0
  %1194 = vmatmul.mubr.f32.gmra.mrb[0].mxu0 %v1102
  %v1195 = vpop.f32.mrb[0].mxu0
  %v1196 = vadd.f32 0.0, %v1195
  %v1197 = vpop.f32.mrb[0].mxu0
  %1198 = vmatprep.mubr.f32.mxu0 0.0
  %1199 = vmatmul.mubr.f32.gmra.mrb[0].mxu0 %v1105
  %v1200 = vpop.f32.mrb[0].mxu0
  %v1201 = vadd.f32 0.0, %v1200
  %v1202 = vpop.f32.mrb[0].mxu0
  %1203 = vmatprep.mubr.f32.mxu0 0.0
  %1204 = vmatmul.mubr.f32.gmra.mrb[0].mxu0 %v1108
  %v1205 = vpop.f32.mrb[0].mxu0
  %v1206 = vadd.f32 0.0, %v1205
  %v1207 = vpop.f32.mrb[0].mxu0
  %1208 = vmatprep.mubr.f32.mxu0 0.0
  %1209 = vmatmul.mubr.f32.gmra.mrb[0].mxu0 %v1111
  %v1210 = vpop.f32.mrb[0].mxu0
  %v1211 = vadd.f32 0.0, %v1210
  %v1212 = vpop.f32.mrb[0].mxu0
  %1213 = vmatprep.mubr.f32.mxu0 0.0
  %1214 = vmatmul.mubr.f32.gmra.mrb[0].mxu0 %v1114
  %v1215 = vpop.f32.mrb[0].mxu0
  %v1216 = vadd.f32 0.0, %v1215
  %v1217 = vpop.f32.mrb[0].mxu0
  %1218 = vmatprep.mubr.f32.mxu0 0.0
  %1219 = vmatmul.mubr.f32.gmra.mrb[0].mxu0 %v1117
  %v1220 = vpop.f32.mrb[0].mxu0
  %v1221 = vadd.f32 0.0, %v1220
  %v1222 = vpop.f32.mrb[0].mxu0
  %1223 = vdwg.mxu0
  %v1224 = vmul.f32 %v993, %v1186
  %v1225 = vmul.f32 %v998, %v1191
  %v1226 = vmul.f32 %v1003, %v1196
  %v1227 = vmul.f32 %v1008, %v1201
  %v1228 = vmul.f32 %v1013, %v1206
  %v1229 = vmul.f32 %v1018, %v1211
  %v1230 = vmul.f32 %v1023, %v1216
  %v1231 = vmul.f32 %v1028, %v1221
  %v1232 = vsel %vm366, %v1224, 0.0
  %1233 = vadd.xlane.f32.xlu0 %v1232
  %v1234 = vpop.xlane.xlu0 %1233
  %v1235 = vsel %vm366, %v1225, 0.0
  %1236 = vadd.xlane.f32.xlu0 %v1235
  %v1237 = vpop.xlane.xlu0 %1236
  %v1238 = vsel %vm366, %v1226, 0.0
  %1239 = vadd.xlane.f32.xlu0 %v1238
  %v1240 = vpop.xlane.xlu0 %1239
  %v1241 = vsel %vm366, %v1227, 0.0
  %1242 = vadd.xlane.f32.xlu0 %v1241
  %v1243 = vpop.xlane.xlu0 %1242
  %v1244 = vsel %vm366, %v1228, 0.0
  %1245 = vadd.xlane.f32.xlu0 %v1244
  %v1246 = vpop.xlane.xlu0 %1245
  %v1247 = vsel %vm366, %v1229, 0.0
  %1248 = vadd.xlane.f32.xlu0 %v1247
  %v1249 = vpop.xlane.xlu0 %1248
  %v1250 = vsel %vm366, %v1230, 0.0
  %1251 = vadd.xlane.f32.xlu0 %v1250
  %v1252 = vpop.xlane.xlu0 %1251
  %v1253 = vsel %vm366, %v1231, 0.0
  %1254 = vadd.xlane.f32.xlu0 %v1253
  %v1255 = vpop.xlane.xlu0 %1254
  %v1256 = vadd.f32 %v1234, %v1237
  %v1257 = vadd.f32 %v1256, %v1240
  %v1258 = vadd.f32 %v1257, %v1243
  %v1259 = vadd.f32 %v1258, %v1246
  %v1260 = vadd.f32 %v1259, %v1249
  %v1261 = vadd.f32 %v1260, %v1252
  %v1262 = vadd.f32 %v1261, %v1255
  %v1263 = vrot.slane %v1262, 4
  %v1264 = vadd.f32 %v1262, %v1263
  %v1265 = vrot.slane %v1264, 2
  %v1266 = vadd.f32 %v1264, %v1265
  %v1267 = vrot.slane %v1266, 1
  %v1268 = vadd.f32 %v1266, %v1267
  %v1269 = vmul.f32 %v18, %v1268
  %1271 = vrot.lane.b32.xlu0 %v1269, 127
  %v1272 = vpop.permute.xlu0 %1271
  %v1274 = vadd.f32 %v735, %v1272
  %v1275 = vmul.f32 %v18, 0.00043402778
  %1277 = vrot.lane.b32.xlu0 %v1275, 127
  %v1278 = vpop.permute.xlu0 %1277
  %v1280 = vadd.f32 %v737, %v1278
  %v1281 = vadd.f32 %v202, %v1280
  %v1282 = vlog2.pop %v1281
  %v1283 = vmul.f32 %v1282, 0.6931472
  %v1284 = vadd.f32 %v1274, 1.0
  %v1285 = vlog2.pop %v1284
  %v1286 = vmul.f32 %v1285, 0.6931472
  %v1287 = vsub.f32 %v1283, %v1286
  %v1288 = vsel %vm198, %v18, 0.0
  %1289 = vadd.xlane.f32.xlu0 %v1288
  %v1290 = vpop.xlane.xlu0 %1289
  %vm1291 = vcmp.gt.f32.partialorder %v1290, 0.0
  %v1292 = vsel %vm1291, %v1287, 0.0
  %1294 = vset.pattern.permute.xlu0 0
  %1295 = vperm.xlu0 %1294, %v1292
  %v1296 = vpop.permute.xlu0 %1295
  %1298 = vst [vmem:[%s4] sm:$0xff] %v1296
  // Predicated region
  $region18: #{complex2_forward.1} parent=0 // pred_check
    _
  $region19: #{complex2_forward.1} parent=0 // pred_check_branch
    %1300 = sbr.rel (0) target = $region21
  $region20: #{complex2_forward.1} parent=0 // pred_region
    _
  $region21: #{complex2_forward.1} parent=0 // pred_fallthru
    _
  // Predicated region
  $region22: #{complex2_forward.1} parent=0 // pred_check
    _
  $region23: #{complex2_forward.1} parent=0 // pred_check_branch
    %1302 = sbr.rel (0) target = $region25
  $region24: #{complex2_forward.1} parent=0 // pred_region
    _
  $region25: #{complex2_forward.1} parent=0 // pred_fallthru
    _

</llo_original>
